<compile_context>
chip_gen: v7x
topology: tpu7x:2x2x1
jax: 0.10.0
libtpu: 0.0.40
codegen_flags: <defaults>
</compile_context>

<pallas_src>
import jax
import jax.numpy as jnp
from jax.experimental import pallas as pl
from jax.experimental.pallas import tpu as pltpu


def _grad_mag_kernel(x_ref, o_ref, xp_ref):
    # x_ref : (bn, 3, H, W)        channel-images (VMEM, auto-pipelined)
    # o_ref : (bn, 3, H+2, W+2)    gradient-magnitude output
    # xp_ref: (bn*3, H+4, W+4)     VMEM scratch holding zero-padded images
    bn, c, h, w = x_ref.shape
    m = bn * c
    ho, wo = h + 2, w + 2

    # Fused zero padding (pad=2 each side), entirely in VMEM.  Only the border
    # strips are zeroed; the interior is overwritten with this step's data, so
    # the scratch is fully (re)defined every step -> correct regardless of how
    # the grid is sharded across cores.
    zrow = jnp.zeros((m, 2, w + 4), jnp.float32)
    xp_ref[:, 0:2, :] = zrow
    xp_ref[:, h + 2:h + 4, :] = zrow
    zcol = jnp.zeros((m, h, 2), jnp.float32)
    xp_ref[:, 2:2 + h, 0:2] = zcol
    xp_ref[:, 2:2 + h, w + 2:w + 4] = zcol
    xp_ref[:, 2:2 + h, 2:2 + w] = x_ref[...].astype(jnp.float32).reshape(m, h, w)

    # Specialized 2-tap stencils -- the 3x3 kernels have only two nonzero taps:
    #   kernel_v = [[0,-1,0],[0,0,0],[0,1,0]] -> v[i,j] = xp[i+2,j+1] - xp[i,j+1]
    #   kernel_h = [[0,0,0],[-1,0,1],[0,0,0]] -> h[i,j] = xp[i+1,j+2] - xp[i+1,j]
    v = xp_ref[:, 2:2 + ho, 1:1 + wo] - xp_ref[:, 0:ho, 1:1 + wo]
    hg = xp_ref[:, 1:1 + ho, 2:2 + wo] - xp_ref[:, 1:1 + ho, 0:wo]
    g = jnp.sqrt(v * v + hg * hg + 1e-6)
    o_ref[...] = g.reshape(bn, c, ho, wo).astype(o_ref.dtype)


def _pick_batch_block(n, h, w, budget_bytes=16 << 20):
    """Largest divisor of `n` (batch images per block) whose double-buffered
    footprint fits the VMEM budget, while keeping >= 2 grid steps so both
    TensorCores get work on megacore parts."""
    per_img = 3 * 4 * (2 * h * w + 2 * (h + 2) * (w + 2) + (h + 4) * (w + 4))
    cap = max(1, min(n, budget_bytes // max(per_img, 1)))
    if n >= 2:
        cap = min(cap, max(1, n // 2))
    bn = 1
    for d in range(1, cap + 1):
        if n % d == 0:
            bn = d
    return bn


def get_gradient(x):
    """x: (N, C>=3, H, W) -> (N, 3, H+2, W+2) float32."""
    n, c, hh, ww = x.shape
    assert c >= 3, "Get_gradient uses channels 0, 1, 2"
    ho, wo = hh + 2, ww + 2

    bn = _pick_batch_block(n, hh, ww)
    grid = (n // bn,)

    # VMEM sizing: double-buffered in/out blocks + padded scratch + margin.
    in_block = bn * 3 * hh * ww * 4
    out_block = bn * 3 * ho * wo * 4
    scratch_bytes = bn * 3 * (hh + 4) * (ww + 4) * 4
    needed = 2 * (in_block + out_block) + scratch_bytes + (2 << 20)
    vmem_limit = int(min(max(needed, 32 << 20), 64 << 20))

    return pl.pallas_call(
        _grad_mag_kernel,
        out_shape=jax.ShapeDtypeStruct((n, 3, ho, wo), jnp.float32),
        grid_spec=pltpu.PrefetchScalarGridSpec(
            num_scalar_prefetch=0,
            grid=grid,
            # Block covers only channels 0..2 of the original NCHW input:
            # no HBM slice/copy is ever materialized even when C > 3.
            in_specs=[pl.BlockSpec((bn, 3, hh, ww), lambda i: (i, 0, 0, 0))],
            out_specs=pl.BlockSpec((bn, 3, ho, wo), lambda i: (i, 0, 0, 0)),
            scratch_shapes=[pltpu.VMEM((bn * 3, hh + 4, ww + 4), jnp.float32)],
        ),
        compiler_params=pltpu.CompilerParams(
            dimension_semantics=("parallel",),
            vmem_limit_bytes=vmem_limit),
    )(x)


def _reference(x):
    """Pure-JAX reference matching the PyTorch forward exactly (dense conv)."""
    wv = jnp.array([[0., -1., 0.], [0., 0., 0.], [0., 1., 0.]], jnp.float32)
    wh = jnp.array([[0., 0., 0.], [-1., 0., 1.], [0., 0., 0.]], jnp.float32)
    x3 = x[:, :3].astype(jnp.float32)
    xp = jnp.pad(x3, ((0, 0), (0, 0), (2, 2), (2, 2)))
    n, c, hp, wp = xp.shape
    ho, wo = hp - 2, wp - 2
    v = jnp.zeros((n, c, ho, wo), jnp.float32)
    h = jnp.zeros((n, c, ho, wo), jnp.float32)
    for ki in range(3):
        for kj in range(3):
            patch = xp[:, :, ki:ki + ho, kj:kj + wo]
            v = v + wv[ki, kj] * patch
            h = h + wh[ki, kj] * patch
    return jnp.sqrt(v * v + h * h + 1e-6)


if __name__ == "__main__":
    key = jax.random.PRNGKey(0)
    x = jax.random.normal(key, (2, 4, 16, 16), dtype=jnp.float32)

    out = jax.block_until_ready(get_gradient(x))
    ref = _reference(x)

    assert out.shape == (2, 3, 18, 18), out.shape
    assert jnp.allclose(out, ref, atol=1e-5, rtol=1e-5), "mismatch vs reference"

    print("KERNEL_OK")
</pallas_src>

<mosaic_0001>
module attributes {stable_mosaic.version = 11 : i64} {
  func.func @_grad_mag_kernel(%arg0: i32, %arg1: memref<1x3x16x16xf32, #tpu.memory_space<vmem>>, %arg2: memref<1x3x18x18xf32, #tpu.memory_space<vmem>>, %arg3: memref<3x20x20xf32, #tpu.memory_space<vmem>>) attributes {dimension_semantics = [#tpu.dimension_semantics<parallel>], iteration_bounds = array<i64: 2>, scalar_prefetch = 0 : i64, scratch_operands = 1 : i64, tpu.core_type = #tpu.core_type<tc>, window_params = [{transform_indices = @transform_0, window_bounds = array<i64: 1, 3, 16, 16>}, {transform_indices = @transform_1, window_bounds = array<i64: 1, 3, 18, 18>}]} {
    %cst = arith.constant 0.000000e+00 : f32
    %0 = vector.broadcast %cst : f32 to vector<3x2x20xf32>
    %c0 = arith.constant 0 : index
    %c0_0 = arith.constant 0 : index
    %c0_1 = arith.constant 0 : index
    %1 = vector.load %arg3[%c0, %c0_0, %c0_1] : memref<3x20x20xf32, #tpu.memory_space<vmem>>, vector<3x2x20xf32>
    tpu.vector_store %arg3[%c0, %c0_0, %c0_1], %0 {strides = array<i32>} : memref<3x20x20xf32, #tpu.memory_space<vmem>>, vector<3x2x20xf32>,
    %c0_2 = arith.constant 0 : index
    %c18 = arith.constant 18 : index
    %c0_3 = arith.constant 0 : index
    %2 = vector.load %arg3[%c0_2, %c18, %c0_3] : memref<3x20x20xf32, #tpu.memory_space<vmem>>, vector<3x2x20xf32>
    tpu.vector_store %arg3[%c0_2, %c18, %c0_3], %0 {strides = array<i32>} : memref<3x20x20xf32, #tpu.memory_space<vmem>>, vector<3x2x20xf32>,
    %cst_4 = arith.constant 0.000000e+00 : f32
    %3 = vector.broadcast %cst_4 : f32 to vector<3x16x2xf32>
    %c0_5 = arith.constant 0 : index
    %c2 = arith.constant 2 : index
    %c0_6 = arith.constant 0 : index
    %4 = vector.load %arg3[%c0_5, %c2, %c0_6] : memref<3x20x20xf32, #tpu.memory_space<vmem>>, vector<3x16x2xf32>
    tpu.vector_store %arg3[%c0_5, %c2, %c0_6], %3 {strides = array<i32>} : memref<3x20x20xf32, #tpu.memory_space<vmem>>, vector<3x16x2xf32>,
    %c0_7 = arith.constant 0 : index
    %c2_8 = arith.constant 2 : index
    %c18_9 = arith.constant 18 : index
    %5 = vector.load %arg3[%c0_7, %c2_8, %c18_9] : memref<3x20x20xf32, #tpu.memory_space<vmem>>, vector<3x16x2xf32>
    tpu.vector_store %arg3[%c0_7, %c2_8, %c18_9], %3 {strides = array<i32>} : memref<3x20x20xf32, #tpu.memory_space<vmem>>, vector<3x16x2xf32>,
    %c0_10 = arith.constant 0 : index
    %c0_11 = arith.constant 0 : index
    %c0_12 = arith.constant 0 : index
    %c0_13 = arith.constant 0 : index
    %6 = vector.load %arg1[%c0_10, %c0_11, %c0_12, %c0_13] : memref<1x3x16x16xf32, #tpu.memory_space<vmem>>, vector<1x3x16x16xf32>
    %7 = vector.shape_cast %6 : vector<1x3x16x16xf32> to vector<3x16x16xf32>
    %c0_14 = arith.constant 0 : index
    %c2_15 = arith.constant 2 : index
    %c2_16 = arith.constant 2 : index
    %8 = vector.load %arg3[%c0_14, %c2_15, %c2_16] : memref<3x20x20xf32, #tpu.memory_space<vmem>>, vector<3x16x16xf32>
    tpu.vector_store %arg3[%c0_14, %c2_15, %c2_16], %7 {strides = array<i32>} : memref<3x20x20xf32, #tpu.memory_space<vmem>>, vector<3x16x16xf32>,
    %c0_17 = arith.constant 0 : index
    %c2_18 = arith.constant 2 : index
    %c1 = arith.constant 1 : index
    %9 = vector.load %arg3[%c0_17, %c2_18, %c1] : memref<3x20x20xf32, #tpu.memory_space<vmem>>, vector<3x18x18xf32>
    %c0_19 = arith.constant 0 : index
    %c0_20 = arith.constant 0 : index
    %c1_21 = arith.constant 1 : index
    %10 = vector.load %arg3[%c0_19, %c0_20, %c1_21] : memref<3x20x20xf32, #tpu.memory_space<vmem>>, vector<3x18x18xf32>
    %11 = arith.subf %9, %10 : vector<3x18x18xf32>
    %c0_22 = arith.constant 0 : index
    %c1_23 = arith.constant 1 : index
    %c2_24 = arith.constant 2 : index
    %12 = vector.load %arg3[%c0_22, %c1_23, %c2_24] : memref<3x20x20xf32, #tpu.memory_space<vmem>>, vector<3x18x18xf32>
    %c0_25 = arith.constant 0 : index
    %c1_26 = arith.constant 1 : index
    %c0_27 = arith.constant 0 : index
    %13 = vector.load %arg3[%c0_25, %c1_26, %c0_27] : memref<3x20x20xf32, #tpu.memory_space<vmem>>, vector<3x18x18xf32>
    %14 = arith.subf %12, %13 : vector<3x18x18xf32>
    %15 = arith.mulf %11, %11 : vector<3x18x18xf32>
    %16 = arith.mulf %14, %14 : vector<3x18x18xf32>
    %17 = arith.addf %15, %16 : vector<3x18x18xf32>
    %cst_28 = arith.constant 9.99999997E-7 : f32
    %18 = vector.broadcast %cst_28 : f32 to vector<3x18x18xf32>
    %19 = arith.addf %17, %18 : vector<3x18x18xf32>
    %20 = math.sqrt %19 : vector<3x18x18xf32>
    %21 = vector.shape_cast %20 : vector<3x18x18xf32> to vector<1x3x18x18xf32>
    %c0_29 = arith.constant 0 : index
    %c0_30 = arith.constant 0 : index
    %c0_31 = arith.constant 0 : index
    %c0_32 = arith.constant 0 : index
    %22 = vector.load %arg2[%c0_29, %c0_30, %c0_31, %c0_32] : memref<1x3x18x18xf32, #tpu.memory_space<vmem>>, vector<1x3x18x18xf32>
    tpu.vector_store %arg2[%c0_29, %c0_30, %c0_31, %c0_32], %21 {strides = array<i32>} : memref<1x3x18x18xf32, #tpu.memory_space<vmem>>, vector<1x3x18x18xf32>,
    return
  }
  func.func @transform_0(%arg0: i32) -> (i32, i32, i32, i32) {
    %c0_i32 = arith.constant 0 : i32
    %c0_i32_0 = arith.constant 0 : i32
    %c0_i32_1 = arith.constant 0 : i32
    %c0_i32_2 = arith.constant 0 : i32
    return %arg0, %c0_i32, %c0_i32_0, %c0_i32_1 : i32, i32, i32, i32
  }
  func.func @transform_1(%arg0: i32) -> (i32, i32, i32, i32) {
    %c0_i32 = arith.constant 0 : i32
    %c0_i32_0 = arith.constant 0 : i32
    %c0_i32_1 = arith.constant 0 : i32
    %c0_i32_2 = arith.constant 0 : i32
    return %arg0, %c0_i32, %c0_i32_0, %c0_i32_1 : i32, i32, i32, i32
  }
}

</mosaic_0001>

<llo_original>
// kernel: tpu_custom_call.1
$region0: #{tpu_custom_call.1}
  #allocation0 [shape = 'u32[]', space=smem, size = 0x4, offset = 0x4, fixed_abs, tag = 'smem constant byte address 0x4 - core index']
  #allocation1 [shape = 'u32[144,128]{1,0:T(1,128)}', space=vmem, size = 0x12000, scoped, tag = 'internal scratch']
  #allocation2 [shape = 'f32[3,20,20]{2,1,0:T(8,128)}', space=vmem, size = 0x9000, scoped, tag = 'scratch operand']
  %s0 = inlined_call_operand.hbm [shape: f32[2,4,16,16], index: 0, kind: input, shape index: {}]
  %s1 = inlined_call_operand.vmem [shape: f32[2,3,18,18], index: 1, kind: output, shape index: {}]
  %s2 = sld [smem:[#allocation0]]
  $region41: #{tpu_custom_call.1} parent=0
    _
  %s4 = ssub.s32 1, %s2
  %s5 = scalar_select 0, %s4, %s2
  $region1: #{tpu_custom_call.1} parent=0
    #allocation3 [shape = 'u8[49152]{0}', space=vmem, size = 0xc000, scoped, tag = 'input window, operand 0']
    #allocation4 [shape = 's32[2]{0}', space=sflag, size = 0x8, scoped, tag = 'scoped memory for tpu_custom_call.1']
    %6 = vsyncpa [#allocation4], 0
    %s7 = scalar_lea.sflag [#allocation4], 1
    %8 = vsyncpa %s7, 0
    loop: start=0, step=1, limit=4
    $region2: #{tpu_custom_call.1} parent=1 // loop_pre_header
      _
    $region3: #{tpu_custom_call.1} parent=1 // loop_header
      %s10 = sphi 0, %s14
      %p11 = scmp.ge.s32.totalorder %s10, 4
      %s20 = sphi 0, %s22
      %s23 = sphi 0, %s20
      %s24 = sphi 0, %s23
      %s40 = sphi 0, %s24
      %s46 = sphi 0, %s48
      %s49 = sphi 0, %s46
      %s50 = sphi 0, %s49
      %s66 = sphi 0, %s50
    $region4: #{tpu_custom_call.1} parent=1 // loop_header_branch
      %13 = sbr.rel (%p11) target = $region8
    $region5: #{tpu_custom_call.1} parent=1 // loop_body
      %s15 = ssub.s32 %s10, 1
      %s16 = ssub.s32 %s10, 2
      %s17 = sadd.s32 %s10, 1
      %s18 = ssub.s32 %s10, %s17
      %p19 = scmp.eq.s32.totalorder %s18, 0
      %s21 = sadd.s32 %s20, 1
      %s22 = scalar_select %p19, %s20, %s21
      %p25 = pneg %p19
      %p26 = scmp.eq.s32.totalorder %s10, 1
      %p27 = por %p25, %p26
      %p28 = scmp.ne.s32.totalorder %s20, %s23
      %p29 = scmp.eq.s32.totalorder %s10, 0
      %p30 = por %p28, %p29
      %p31 = scmp.ne.s32.totalorder %s20, %s23
      %p32 = scmp.eq.s32.totalorder %s15, 1
      %p33 = por %p31, %p32
      %p34 = scmp.ne.s32.totalorder %s23, %s24
      %p35 = scmp.eq.s32.totalorder %s15, 0
      %p36 = por %p34, %p35
      %p37 = scmp.ne.s32.totalorder %s23, %s24
      %p38 = scmp.eq.s32.totalorder %s16, 1
      %p39 = por %p37, %p38
      %p41 = scmp.ne.s32.totalorder %s24, %s40
      %p42 = scmp.eq.s32.totalorder %s16, 0
      %p43 = por %p41, %p42
      %s44 = ssub.s32 %s10, %s17
      %p45 = scmp.eq.s32.totalorder %s44, 0
      %s47 = sadd.s32 %s46, 1
      %s48 = scalar_select %p45, %s46, %s47
      %p51 = pneg %p45
      %p52 = scmp.eq.s32.totalorder %s10, 1
      %p53 = por %p51, %p52
      %p54 = scmp.ne.s32.totalorder %s46, %s49
      %p55 = scmp.eq.s32.totalorder %s10, 0
      %p56 = por %p54, %p55
      %p57 = scmp.ne.s32.totalorder %s46, %s49
      %p58 = scmp.eq.s32.totalorder %s15, 1
      %p59 = por %p57, %p58
      %p60 = scmp.ne.s32.totalorder %s49, %s50
      %p61 = scmp.eq.s32.totalorder %s15, 0
      %p62 = por %p60, %p61
      %p63 = scmp.ne.s32.totalorder %s49, %s50
      %p64 = scmp.eq.s32.totalorder %s16, 1
      %p65 = por %p63, %p64
      %p67 = scmp.ne.s32.totalorder %s50, %s66
      %p68 = scmp.eq.s32.totalorder %s16, 0
      %p69 = por %p67, %p68
      %p70 = scmp.le.s32.totalorder 1, %s10
      %p71 = scmp.lt.s32.totalorder %s10, 3
      %p72 = pnand %p70, %p71
      %p73 = pneg %p72
      // Predicated region
      $region9: #{tpu_custom_call.1} parent=5 // pred_check
        _
      $region10: #{tpu_custom_call.1} parent=5 // pred_check_branch
        %75 = sbr.rel (%p72) target = $region12
      $region11: #{tpu_custom_call.1} parent=5 // pred_region
        %s76 = ssub.s32 %s10, 1
      $region12: #{tpu_custom_call.1} parent=5 // pred_fallthru
        _
      %p77 = scmp.lt.s32.totalorder %s10, 2
      // Predicated region
      $region13: #{tpu_custom_call.1} parent=5 // pred_check
        %p78 = pneg %p77
      $region14: #{tpu_custom_call.1} parent=5 // pred_check_branch
        %80 = sbr.rel (%p78) target = $region16
      $region15: #{tpu_custom_call.1} parent=5 // pred_region
        // Predicated region
        $region17: #{tpu_custom_call.1} parent=15 // pred_check
          %p81 = pneg %p30
        $region18: #{tpu_custom_call.1} parent=15 // pred_check_branch
          %83 = sbr.rel (%p81) target = $region20
        $region19: #{tpu_custom_call.1} parent=15 // pred_region
          %s84 = sand.u32 %s20, 1
          %s85 = scalar_lea.sflag [#allocation4], %s84
          %s86 = sand.u32 %s20, 1
          %s87 = smul.addr %s86, 48
          %s88 = scalar_lea.vmem [#allocation3], %s87
          %s90 = ssub.s32 768, 768
          %91 = vsyncadd %s85, %s90
          %s92 = smul.addr %s10, 8
          %s93 = smul.addr %s92, 128
          %s94 = scalar_lea.hbm %s0, %s93
          %s95 = sshll.u32 %s88, 4
          %s96 = int_to_ptr.vmem [resolvable:$true] %s95
          %101 = dma.hbm_to_vmem [thread:$0]  %s94, 768, %s96, %s85, 128, 128, 8
        $region20: #{tpu_custom_call.1} parent=15 // pred_fallthru
          _
      $region16: #{tpu_custom_call.1} parent=5 // pred_fallthru
        _
      %p102 = scmp.le.s32.totalorder 1, %s10
      %p103 = scmp.lt.s32.totalorder %s10, 3
      %p104 = pnand %p102, %p103
      %p105 = pneg %p104
      // Predicated region
      $region21: #{tpu_custom_call.1} parent=5 // pred_check
        _
      $region22: #{tpu_custom_call.1} parent=5 // pred_check_branch
        %107 = sbr.rel (%p104) target = $region24
      $region23: #{tpu_custom_call.1} parent=5 // pred_region
        %s108 = ssub.s32 %s10, 1
        %s109 = sand.u32 %s23, 1
        %s110 = scalar_lea.sflag [#allocation4], %s109
        %s111 = sand.u32 %s23, 1
        %s112 = smul.addr %s111, 48
        %s113 = scalar_lea.vmem [#allocation3], %s112
        // Predicated region
        $region25: #{tpu_custom_call.1} parent=23 // pred_check
          %p114 = pneg %p36
        $region26: #{tpu_custom_call.1} parent=23 // pred_check_branch
          %116 = sbr.rel (%p114) target = $region28
        $region27: #{tpu_custom_call.1} parent=23 // pred_region
          %117 = dma.done %s110, 768
        $region28: #{tpu_custom_call.1} parent=23 // pred_fallthru
          _
        %s118 = sand.u32 %s23, 1
        %s119 = scalar_lea.sflag [#allocation4], %s118
        %s120 = sand.u32 %s23, 1
        %s121 = smul.addr %s120, 48
        %s122 = scalar_lea.vmem [#allocation3], %s121
        %p123 = pneg %p36
        %p124 = pneg %p33
        %p125 = pneg %p62
        %p126 = pneg %p59
        %p127 = scmp.lt.s32.totalorder %s15, 1
        %s128 = scalar_select %p127, %s15, 1
        %s129 = smul.addr %s128, 9
        %s130 = smul.addr %s129, 8
        %s131 = scalar_lea.vmem %s1, %s130
        %p132 = scmp.lt.s32.totalorder %s15, 1
        %s133 = scalar_select %p132, %s15, 1
        %s134 = smul.addr %s133, 9
        %s135 = smul.addr %s134, 8
        %s136 = scalar_lea.vmem %s1, %s135
        %vm137 = vcmask 156672
        %138 = vst.msk [vmem:[#allocation2] sm:$0x3] %vm137, 0.0
        %139 = vst.msk [vmem:[#allocation2 + $0x18] sm:$0x3] %vm137, 0.0
        %140 = vst.msk [vmem:[#allocation2 + $0x30] sm:$0x3] %vm137, 0.0
        %141 = vst.msk [vmem:[#allocation2 + $0x12] sm:$0x3] %vm137, 0.0
        %142 = vst.msk [vmem:[#allocation2 + $0x2a] sm:$0x3] %vm137, 0.0
        %143 = vst.msk [vmem:[#allocation2 + $0x42] sm:$0x3] %vm137, 0.0
        %vm144 = vcmask 15360
        %145 = vst.msk [vmem:[#allocation2 + $0x2] sm:$0xff] %vm144, 0.0
        %146 = vst.msk [vmem:[#allocation2 + $0xa] sm:$0xff] %vm144, 0.0
        %147 = vst.msk [vmem:[#allocation2 + $0x1a] sm:$0xff] %vm144, 0.0
        %148 = vst.msk [vmem:[#allocation2 + $0x22] sm:$0xff] %vm144, 0.0
        %149 = vst.msk [vmem:[#allocation2 + $0x32] sm:$0xff] %vm144, 0.0
        %150 = vst.msk [vmem:[#allocation2 + $0x3a] sm:$0xff] %vm144, 0.0
        %vm151 = vcmask 162960
        %152 = vst.msk [vmem:[#allocation2 + $0x2] sm:$0xff] %vm151, 0.0
        %153 = vst.msk [vmem:[#allocation2 + $0xa] sm:$0xff] %vm151, 0.0
        %154 = vst.msk [vmem:[#allocation2 + $0x1a] sm:$0xff] %vm151, 0.0
        %155 = vst.msk [vmem:[#allocation2 + $0x22] sm:$0xff] %vm151, 0.0
        %156 = vst.msk [vmem:[#allocation2 + $0x32] sm:$0xff] %vm151, 0.0
        %157 = vst.msk [vmem:[#allocation2 + $0x3a] sm:$0xff] %vm151, 0.0
        %v158 = vld [vmem:[%s113] sm:$0xff]
        %v159 = vld [vmem:[%s113 + $0x8] sm:$0xff]
        %v160 = vld [vmem:[%s113 + $0x10] sm:$0xff]
        %v161 = vld [vmem:[%s113 + $0x18] sm:$0xff]
        %v162 = vld [vmem:[%s113 + $0x20] sm:$0xff]
        %v163 = vld [vmem:[%s113 + $0x28] sm:$0xff]
        %170 = vrot.lane.b32.xlu0 %v158, 2
        %v171 = vpop.permute.xlu0 %170
        %172 = vrot.lane.b32.xlu0 %v159, 2
        %v173 = vpop.permute.xlu0 %172
        %174 = vrot.lane.b32.xlu0 %v160, 2
        %v175 = vpop.permute.xlu0 %174
        %176 = vrot.lane.b32.xlu0 %v161, 2
        %v177 = vpop.permute.xlu0 %176
        %178 = vrot.lane.b32.xlu0 %v162, 2
        %v179 = vpop.permute.xlu0 %178
        %180 = vrot.lane.b32.xlu0 %v163, 2
        %v181 = vpop.permute.xlu0 %180
        %vm188 = vcmask 146448
        %189 = vst.msk [vmem:[#allocation2 + $0x2] sm:$0xff] %vm188, %v171
        %190 = vst.msk [vmem:[#allocation2 + $0xa] sm:$0xff] %vm188, %v173
        %191 = vst.msk [vmem:[#allocation2 + $0x1a] sm:$0xff] %vm188, %v175
        %192 = vst.msk [vmem:[#allocation2 + $0x22] sm:$0xff] %vm188, %v177
        %193 = vst.msk [vmem:[#allocation2 + $0x32] sm:$0xff] %vm188, %v179
        %194 = vst.msk [vmem:[#allocation2 + $0x3a] sm:$0xff] %vm188, %v181
        %v195 = vld [vmem:[#allocation2 + $0x2] sm:$0xff]
        %v196 = vld [vmem:[#allocation2 + $0xa] sm:$0xff]
        %v197 = vld [vmem:[#allocation2 + $0x12] sm:$0x3]
        %v198 = vld [vmem:[#allocation2 + $0x1a] sm:$0xff]
        %v199 = vld [vmem:[#allocation2 + $0x22] sm:$0xff]
        %v200 = vld [vmem:[#allocation2 + $0x2a] sm:$0x3]
        %v201 = vld [vmem:[#allocation2 + $0x32] sm:$0xff]
        %v202 = vld [vmem:[#allocation2 + $0x3a] sm:$0xff]
        %v203 = vld [vmem:[#allocation2 + $0x42] sm:$0x3]
        %v204 = vld [vmem:[#allocation2] sm:$0xff]
        %v205 = vld [vmem:[#allocation2 + $0x8] sm:$0xff]
        %v206 = vld [vmem:[#allocation2 + $0x10] sm:$0x3]
        %v207 = vld [vmem:[#allocation2 + $0x18] sm:$0xff]
        %v208 = vld [vmem:[#allocation2 + $0x20] sm:$0xff]
        %v209 = vld [vmem:[#allocation2 + $0x28] sm:$0x3]
        %v210 = vld [vmem:[#allocation2 + $0x30] sm:$0xff]
        %v211 = vld [vmem:[#allocation2 + $0x38] sm:$0xff]
        %v212 = vld [vmem:[#allocation2 + $0x40] sm:$0x3]
        %v213 = vsub.f32 %v195, %v204
        %v214 = vsub.f32 %v196, %v205
        %v215 = vsub.f32 %v197, %v206
        %v216 = vsub.f32 %v198, %v207
        %v217 = vsub.f32 %v199, %v208
        %v218 = vsub.f32 %v200, %v209
        %v219 = vsub.f32 %v201, %v210
        %v220 = vsub.f32 %v202, %v211
        %v221 = vsub.f32 %v203, %v212
        %v222 = vld [vmem:[#allocation2 + $0x1] sm:$0xff]
        %v223 = vld [vmem:[#allocation2 + $0x9] sm:$0xff]
        %v224 = vld [vmem:[#allocation2 + $0x11] sm:$0x3]
        %v225 = vld [vmem:[#allocation2 + $0x19] sm:$0xff]
        %v226 = vld [vmem:[#allocation2 + $0x21] sm:$0xff]
        %v227 = vld [vmem:[#allocation2 + $0x29] sm:$0x3]
        %v228 = vld [vmem:[#allocation2 + $0x31] sm:$0xff]
        %v229 = vld [vmem:[#allocation2 + $0x39] sm:$0xff]
        %v230 = vld [vmem:[#allocation2 + $0x41] sm:$0x3]
        %240 = vrot.lane.b32.xlu0 %v222, 2
        %v241 = vpop.permute.xlu0 %240
        %242 = vrot.lane.b32.xlu0 %v223, 2
        %v243 = vpop.permute.xlu0 %242
        %244 = vrot.lane.b32.xlu0 %v224, 2
        %v245 = vpop.permute.xlu0 %244
        %246 = vrot.lane.b32.xlu0 %v225, 2
        %v247 = vpop.permute.xlu0 %246
        %248 = vrot.lane.b32.xlu0 %v226, 2
        %v249 = vpop.permute.xlu0 %248
        %250 = vrot.lane.b32.xlu0 %v227, 2
        %v251 = vpop.permute.xlu0 %250
        %252 = vrot.lane.b32.xlu0 %v228, 2
        %v253 = vpop.permute.xlu0 %252
        %254 = vrot.lane.b32.xlu0 %v229, 2
        %v255 = vpop.permute.xlu0 %254
        %256 = vrot.lane.b32.xlu0 %v230, 2
        %v257 = vpop.permute.xlu0 %256
        %v267 = vsub.f32 %v222, %v241
        %v268 = vsub.f32 %v223, %v243
        %v269 = vsub.f32 %v224, %v245
        %v270 = vsub.f32 %v225, %v247
        %v271 = vsub.f32 %v226, %v249
        %v272 = vsub.f32 %v227, %v251
        %v273 = vsub.f32 %v228, %v253
        %v274 = vsub.f32 %v229, %v255
        %v275 = vsub.f32 %v230, %v257
        %v276 = vmul.f32 %v213, %v213
        %v277 = vmul.f32 %v214, %v214
        %v278 = vmul.f32 %v215, %v215
        %v279 = vmul.f32 %v216, %v216
        %v280 = vmul.f32 %v217, %v217
        %v281 = vmul.f32 %v218, %v218
        %v282 = vmul.f32 %v219, %v219
        %v283 = vmul.f32 %v220, %v220
        %v284 = vmul.f32 %v221, %v221
        %v285 = vmul.f32 %v267, %v267
        %v286 = vmul.f32 %v268, %v268
        %v287 = vmul.f32 %v269, %v269
        %v288 = vmul.f32 %v270, %v270
        %v289 = vmul.f32 %v271, %v271
        %v290 = vmul.f32 %v272, %v272
        %v291 = vmul.f32 %v273, %v273
        %v292 = vmul.f32 %v274, %v274
        %v293 = vmul.f32 %v275, %v275
        %303 = vrot.lane.b32.xlu0 %v285, 127
        %v304 = vpop.permute.xlu0 %303
        %305 = vrot.lane.b32.xlu0 %v286, 127
        %v306 = vpop.permute.xlu0 %305
        %307 = vrot.lane.b32.xlu0 %v287, 127
        %v308 = vpop.permute.xlu0 %307
        %309 = vrot.lane.b32.xlu0 %v288, 127
        %v310 = vpop.permute.xlu0 %309
        %311 = vrot.lane.b32.xlu0 %v289, 127
        %v312 = vpop.permute.xlu0 %311
        %313 = vrot.lane.b32.xlu0 %v290, 127
        %v314 = vpop.permute.xlu0 %313
        %315 = vrot.lane.b32.xlu0 %v291, 127
        %v316 = vpop.permute.xlu0 %315
        %317 = vrot.lane.b32.xlu0 %v292, 127
        %v318 = vpop.permute.xlu0 %317
        %319 = vrot.lane.b32.xlu0 %v293, 127
        %v320 = vpop.permute.xlu0 %319
        %v330 = vadd.f32 %v276, %v304
        %v331 = vadd.f32 %v277, %v306
        %v332 = vadd.f32 %v278, %v308
        %v333 = vadd.f32 %v279, %v310
        %v334 = vadd.f32 %v280, %v312
        %v335 = vadd.f32 %v281, %v314
        %v336 = vadd.f32 %v282, %v316
        %v337 = vadd.f32 %v283, %v318
        %v338 = vadd.f32 %v284, %v320
        %v339 = vadd.f32 %v330, 1e-06
        %v340 = vadd.f32 %v331, 1e-06
        %v341 = vadd.f32 %v332, 1e-06
        %v342 = vadd.f32 %v333, 1e-06
        %v343 = vadd.f32 %v334, 1e-06
        %v344 = vadd.f32 %v335, 1e-06
        %v345 = vadd.f32 %v336, 1e-06
        %v346 = vadd.f32 %v337, 1e-06
        %v347 = vadd.f32 %v338, 1e-06
        %v348 = vrsqrt.pop %v339
        %v349 = vmul.f32 %v339, %v348
        %vm350 = vcmp.eq.f32.partialorder %v339, inf
        %v351 = vsel %vm350, %v339, %v349
        %vm352 = vcmp.eq.f32.partialorder %v339, 0.0
        %v353 = vand.u32 %v339, 2147483648
        %v354 = vsel %vm352, %v353, %v351
        %v355 = vrsqrt.pop %v340
        %v356 = vmul.f32 %v340, %v355
        %vm357 = vcmp.eq.f32.partialorder %v340, inf
        %v358 = vsel %vm357, %v340, %v356
        %vm359 = vcmp.eq.f32.partialorder %v340, 0.0
        %v360 = vand.u32 %v340, 2147483648
        %v361 = vsel %vm359, %v360, %v358
        %v362 = vrsqrt.pop %v341
        %v363 = vmul.f32 %v341, %v362
        %vm364 = vcmp.eq.f32.partialorder %v341, inf
        %v365 = vsel %vm364, %v341, %v363
        %vm366 = vcmp.eq.f32.partialorder %v341, 0.0
        %v367 = vand.u32 %v341, 2147483648
        %v368 = vsel %vm366, %v367, %v365
        %v369 = vrsqrt.pop %v342
        %v370 = vmul.f32 %v342, %v369
        %vm371 = vcmp.eq.f32.partialorder %v342, inf
        %v372 = vsel %vm371, %v342, %v370
        %vm373 = vcmp.eq.f32.partialorder %v342, 0.0
        %v374 = vand.u32 %v342, 2147483648
        %v375 = vsel %vm373, %v374, %v372
        %v376 = vrsqrt.pop %v343
        %v377 = vmul.f32 %v343, %v376
        %vm378 = vcmp.eq.f32.partialorder %v343, inf
        %v379 = vsel %vm378, %v343, %v377
        %vm380 = vcmp.eq.f32.partialorder %v343, 0.0
        %v381 = vand.u32 %v343, 2147483648
        %v382 = vsel %vm380, %v381, %v379
        %v383 = vrsqrt.pop %v344
        %v384 = vmul.f32 %v344, %v383
        %vm385 = vcmp.eq.f32.partialorder %v344, inf
        %v386 = vsel %vm385, %v344, %v384
        %vm387 = vcmp.eq.f32.partialorder %v344, 0.0
        %v388 = vand.u32 %v344, 2147483648
        %v389 = vsel %vm387, %v388, %v386
        %v390 = vrsqrt.pop %v345
        %v391 = vmul.f32 %v345, %v390
        %vm392 = vcmp.eq.f32.partialorder %v345, inf
        %v393 = vsel %vm392, %v345, %v391
        %vm394 = vcmp.eq.f32.partialorder %v345, 0.0
        %v395 = vand.u32 %v345, 2147483648
        %v396 = vsel %vm394, %v395, %v393
        %v397 = vrsqrt.pop %v346
        %v398 = vmul.f32 %v346, %v397
        %vm399 = vcmp.eq.f32.partialorder %v346, inf
        %v400 = vsel %vm399, %v346, %v398
        %vm401 = vcmp.eq.f32.partialorder %v346, 0.0
        %v402 = vand.u32 %v346, 2147483648
        %v403 = vsel %vm401, %v402, %v400
        %v404 = vrsqrt.pop %v347
        %v405 = vmul.f32 %v347, %v404
        %vm406 = vcmp.eq.f32.partialorder %v347, inf
        %v407 = vsel %vm406, %v347, %v405
        %vm408 = vcmp.eq.f32.partialorder %v347, 0.0
        %v409 = vand.u32 %v347, 2147483648
        %v410 = vsel %vm408, %v409, %v407
        %420 = vrot.lane.b32.xlu0 %v354, 127
        %v421 = vpop.permute.xlu0 %420
        %422 = vrot.lane.b32.xlu0 %v361, 127
        %v423 = vpop.permute.xlu0 %422
        %424 = vrot.lane.b32.xlu0 %v368, 127
        %v425 = vpop.permute.xlu0 %424
        %426 = vrot.lane.b32.xlu0 %v375, 127
        %v427 = vpop.permute.xlu0 %426
        %428 = vrot.lane.b32.xlu0 %v382, 127
        %v429 = vpop.permute.xlu0 %428
        %430 = vrot.lane.b32.xlu0 %v389, 127
        %v431 = vpop.permute.xlu0 %430
        %432 = vrot.lane.b32.xlu0 %v396, 127
        %v433 = vpop.permute.xlu0 %432
        %434 = vrot.lane.b32.xlu0 %v403, 127
        %v435 = vpop.permute.xlu0 %434
        %436 = vrot.lane.b32.xlu0 %v410, 127
        %v437 = vpop.permute.xlu0 %436
        %vm447 = vcmask 146432
        %448 = vst.msk [vmem:[%s136] sm:$0xff] %vm447, %v421
        %449 = vst.msk [vmem:[%s136 + $0x8] sm:$0xff] %vm447, %v423
        %vm450 = vcmask 140288
        %451 = vst.msk [vmem:[%s136 + $0x10] sm:$0x3] %vm450, %v425
        %452 = vst.msk [vmem:[%s136 + $0x18] sm:$0xff] %vm447, %v427
        %453 = vst.msk [vmem:[%s136 + $0x20] sm:$0xff] %vm447, %v429
        %454 = vst.msk [vmem:[%s136 + $0x28] sm:$0x3] %vm450, %v431
        %455 = vst.msk [vmem:[%s136 + $0x30] sm:$0xff] %vm447, %v433
        %456 = vst.msk [vmem:[%s136 + $0x38] sm:$0xff] %vm447, %v435
        %457 = vst.msk [vmem:[%s136 + $0x40] sm:$0x3] %vm450, %v437
        %p458 = scmp.lt.s32.totalorder %s15, 1
        %s459 = scalar_select %p458, %s15, 1
        %s460 = smul.addr %s459, 9
        %s461 = smul.addr %s460, 8
        %s462 = scalar_lea.vmem %s1, %s461
        // Predicated region
        $region29: #{tpu_custom_call.1} parent=23 // pred_check
          %p463 = pneg %p59
        $region30: #{tpu_custom_call.1} parent=23 // pred_check_branch
          %465 = sbr.rel (%p463) target = $region32
        $region31: #{tpu_custom_call.1} parent=23 // pred_region
          _
        $region32: #{tpu_custom_call.1} parent=23 // pred_fallthru
          _
      $region24: #{tpu_custom_call.1} parent=5 // pred_fallthru
        _
      %p466 = scmp.le.s32.totalorder 2, %s10
      // Predicated region
      $region33: #{tpu_custom_call.1} parent=5 // pred_check
        %p467 = pneg %p466
      $region34: #{tpu_custom_call.1} parent=5 // pred_check_branch
        %469 = sbr.rel (%p467) target = $region36
      $region35: #{tpu_custom_call.1} parent=5 // pred_region
        %s470 = ssub.s32 %s10, 2
        // Predicated region
        $region37: #{tpu_custom_call.1} parent=35 // pred_check
          %p471 = pneg %p65
        $region38: #{tpu_custom_call.1} parent=35 // pred_check_branch
          %473 = sbr.rel (%p471) target = $region40
        $region39: #{tpu_custom_call.1} parent=35 // pred_region
          %p474 = scmp.lt.s32.totalorder %s16, 1
          %s475 = scalar_select %p474, %s16, 1
          %s476 = smul.addr %s475, 9
          %s477 = smul.addr %s476, 8
          %s478 = scalar_lea.vmem %s1, %s477
        $region40: #{tpu_custom_call.1} parent=35 // pred_fallthru
          _
      $region36: #{tpu_custom_call.1} parent=5 // pred_fallthru
        _
    $region6: #{tpu_custom_call.1} parent=1 // loop_footer
      %s14 = sadd.s32 1, %s10
    $region7: #{tpu_custom_call.1} parent=1 // loop_footer_branch
      %9 = sbr.rel target = $region3
    $region8: #{tpu_custom_call.1} parent=1 // loop_exit
      _
    %479 = vsyncpa [#allocation4], 1
    %s480 = scalar_lea.sflag [#allocation4], 1
    %481 = vsyncpa %s480, 1

</llo_original>
